<compile_context>
chip_gen: v6e
topology: v6e:2x2x1
jax: 0.10.0
libtpu: 0.0.40
codegen_flags: <defaults>
</compile_context>

<pallas_src>
import jax
import jax.numpy as jnp
from jax.experimental import pallas as pl
from jax.experimental.pallas import tpu as pltpu


_LANES = 1024                                 # lane-dense last dim (multiple of 128) -> unmasked vst
_MAX_TILE_ROWS = 512                          # (512, 1024) f32 tile = 2 MiB/stream; 4 streams x 2 bufs = 16 MiB
_DEFAULT_SMALL_N = _MAX_TILE_ROWS * _LANES    # below ~one tile a fused XLA elementwise beats a pallas_call
_VMEM_LIMIT_BYTES = 32 * 1024 * 1024          # explicit scoped-VMEM limit; safe on v5e / v6e / v7x


def _sublane_multiple(dtype):
    """Minimum second-to-last block dim for this dtype's sublane packing."""
    itemsize = int(jnp.dtype(dtype).itemsize)
    return max(8, 32 // max(itemsize, 1))     # f32 -> 8, bf16/f16 -> 16, int8/uint8 -> 32


def _rel_root_depth_loss_kernel(out_ref, gt_ref, valid_ref, loss_ref):
    # Pure VPU elementwise.  Inputs are loaded at native width; the casts are free
    # filler next to the HBM-bound DMA streams.  Full-width lanes -> unmasked vst.
    acc_t = loss_ref.dtype
    diff = out_ref[...].astype(acc_t) - gt_ref[...].astype(acc_t)
    loss_ref[...] = jnp.abs(diff) * valid_ref[...].astype(acc_t)


def rel_root_depth_loss(root_depth_out, root_depth_gt, root_valid, *,
                        max_tile_rows=_MAX_TILE_ROWS,
                        small_n_threshold=_DEFAULT_SMALL_N):
    """|out - gt| * valid, elementwise.  Output shape == input shape, dtype = promoted."""
    assert root_depth_out.shape == root_depth_gt.shape == root_valid.shape, (
        "all inputs must share one shape")

    orig_shape = root_depth_out.shape
    # Promoted result dtype mirrors PyTorch type promotion.
    out_dtype = jnp.result_type(root_depth_out.dtype, root_depth_gt.dtype,
                                root_valid.dtype)

    n = 1
    for d in orig_shape:
        n *= d

    def _jnp_loss():
        o = root_depth_out.astype(out_dtype)
        g = root_depth_gt.astype(out_dtype)
        v = root_valid.astype(out_dtype)
        return jnp.abs(o - g) * v

    # Fast path:
    #  * tiny n (the module's real (B, 1) inputs): pallas_call launch + repack costs
    #    orders of magnitude more than the fused XLA elementwise;
    #  * ragged n (not a multiple of 1024): presenting a lane-dense 2-D view would
    #    require pad/slice copies that cost more HBM traffic than the op itself, so
    #    the fused XLA elementwise (same 4 passes, ~roofline) is the faster choice.
    if n < small_n_threshold or n % _LANES != 0 or n == 0:
        return _jnp_loss()

    def _narrow(x):
        # Keep the validity mask (and any bool input) at 1 byte/elem on the wire.
        return x.astype(jnp.uint8) if x.dtype == jnp.bool_ else x

    o = _narrow(root_depth_out)
    g = _narrow(root_depth_gt)
    v = _narrow(root_valid)

    rows = n // _LANES
    sub = max(_sublane_multiple(o.dtype), _sublane_multiple(g.dtype),
              _sublane_multiple(v.dtype), _sublane_multiple(out_dtype))

    if rows <= max_tile_rows:
        tile_rows = rows                                      # full-dim block: always legal
    else:
        tile_rows = max(sub, (max_tile_rows // sub) * sub)    # dtype-packed sublane multiple
    num_blocks = pl.cdiv(rows, tile_rows)                     # ragged last block is masked by Pallas

    # Free views (contiguous, exact size): no pad, no copy.
    o2 = o.reshape(rows, _LANES)
    g2 = g.reshape(rows, _LANES)
    v2 = v.reshape(rows, _LANES)

    spec = pl.BlockSpec((tile_rows, _LANES), lambda i: (i, 0))

    bytes_accessed = n * (o.dtype.itemsize + g.dtype.itemsize + v.dtype.itemsize
                          + jnp.dtype(out_dtype).itemsize)
    cost = pl.CostEstimate(flops=3 * n, transcendentals=0, bytes_accessed=bytes_accessed)

    loss2d = pl.pallas_call(
        _rel_root_depth_loss_kernel,
        out_shape=jax.ShapeDtypeStruct((rows, _LANES), out_dtype),
        grid=(num_blocks,),
        in_specs=[spec, spec, spec],
        out_specs=spec,
        compiler_params=pltpu.CompilerParams(
            # TODO(synk): on v7x (2 TensorCores, per-TC HBM paths) switch this axis to
            # pltpu.CORE_PARALLEL (or split via pl.core_map) to genuinely shard the
            # bandwidth-bound loop across both cores.
            dimension_semantics=("parallel",),
            vmem_limit_bytes=_VMEM_LIMIT_BYTES,
        ),
        cost_estimate=cost,
    )(o2, g2, v2)

    # Free view back to the caller's layout (same element count, contiguous).
    return loss2d.reshape(orig_shape)


if __name__ == "__main__":
    key = jax.random.PRNGKey(0)
    ks = jax.random.split(key, 9)

    # --- 1) Module-faithful shapes: (B, 1), B = 2 -> small-n fast path ------------
    B = 2
    o1 = jax.random.normal(ks[0], (B, 1), dtype=jnp.float32)
    g1 = jax.random.normal(ks[1], (B, 1), dtype=jnp.float32)
    v1 = (jax.random.uniform(ks[2], (B, 1)) > 0.5).astype(jnp.float32)
    l1 = rel_root_depth_loss(o1, g1, v1)
    jax.block_until_ready(l1)
    r1 = jnp.abs(o1 - g1) * v1
    assert l1.shape == r1.shape and l1.dtype == r1.dtype
    assert jnp.allclose(l1, r1, atol=1e-6), "mismatch vs reference (B=2 fast path)"

    # --- 2) Kernel path: multi-step grid with a ragged, masked last block ---------
    #     rows=20, tile_rows=8 -> grid=3, last block covers only 4 valid rows.
    o2 = jax.random.normal(ks[3], (20, 1024), dtype=jnp.float32)
    g2 = jax.random.normal(ks[4], (20, 1024), dtype=jnp.float32)
    v2 = (jax.random.uniform(ks[5], (20, 1024)) > 0.5).astype(jnp.float32)
    l2 = rel_root_depth_loss(o2, g2, v2, max_tile_rows=8, small_n_threshold=0)
    jax.block_until_ready(l2)
    r2 = jnp.abs(o2 - g2) * v2
    assert l2.shape == r2.shape and l2.dtype == r2.dtype
    assert jnp.allclose(l2, r2, atol=1e-6), "mismatch vs reference (ragged grid)"

    # --- 3) Default kernel path: (2048, 1024) -> tile_rows=512, 4 pipelined steps --
    o3 = jax.random.normal(ks[6], (2048, 1024), dtype=jnp.float32)
    g3 = jax.random.normal(ks[7], (2048, 1024), dtype=jnp.float32)
    v3 = (jax.random.uniform(ks[8], (2048, 1024)) > 0.5).astype(jnp.float32)
    l3 = rel_root_depth_loss(o3, g3, v3)
    jax.block_until_ready(l3)
    r3 = jnp.abs(o3 - g3) * v3
    assert l3.shape == r3.shape and l3.dtype == r3.dtype
    assert jnp.allclose(l3, r3, atol=1e-6), "mismatch vs reference (default path)"

    print("KERNEL_OK")
</pallas_src>

<mosaic_0001>
module attributes {stable_mosaic.version = 11 : i64} {
  func.func @_rel_root_depth_loss_kernel(%arg0: i32, %arg1: memref<8x1024xf32, #tpu.memory_space<vmem>>, %arg2: memref<8x1024xf32, #tpu.memory_space<vmem>>, %arg3: memref<8x1024xf32, #tpu.memory_space<vmem>>, %arg4: memref<8x1024xf32, #tpu.memory_space<vmem>>) attributes {dimension_semantics = [#tpu.dimension_semantics<parallel>], iteration_bounds = array<i64: 3>, scalar_prefetch = 0 : i64, scratch_operands = 0 : i64, tpu.core_type = #tpu.core_type<tc>, window_params = [{transform_indices = @transform_0, window_bounds = array<i64: 8, 1024>}, {transform_indices = @transform_1, window_bounds = array<i64: 8, 1024>}, {transform_indices = @transform_2, window_bounds = array<i64: 8, 1024>}, {transform_indices = @transform_3, window_bounds = array<i64: 8, 1024>}]} {
    %c0 = arith.constant 0 : index
    %c0_0 = arith.constant 0 : index
    %0 = vector.load %arg1[%c0, %c0_0] : memref<8x1024xf32, #tpu.memory_space<vmem>>, vector<8x1024xf32>
    %c0_1 = arith.constant 0 : index
    %c0_2 = arith.constant 0 : index
    %1 = vector.load %arg2[%c0_1, %c0_2] : memref<8x1024xf32, #tpu.memory_space<vmem>>, vector<8x1024xf32>
    %2 = arith.subf %0, %1 : vector<8x1024xf32>
    %3 = math.absf %2 : vector<8x1024xf32>
    %c0_3 = arith.constant 0 : index
    %c0_4 = arith.constant 0 : index
    %4 = vector.load %arg3[%c0_3, %c0_4] : memref<8x1024xf32, #tpu.memory_space<vmem>>, vector<8x1024xf32>
    %5 = arith.mulf %3, %4 : vector<8x1024xf32>
    %c0_5 = arith.constant 0 : index
    %c0_6 = arith.constant 0 : index
    %6 = vector.load %arg4[%c0_5, %c0_6] : memref<8x1024xf32, #tpu.memory_space<vmem>>, vector<8x1024xf32>
    tpu.vector_store %arg4[%c0_5, %c0_6], %5 {strides = array<i32>} : memref<8x1024xf32, #tpu.memory_space<vmem>>, vector<8x1024xf32>,
    return
  }
  func.func @transform_0(%arg0: i32) -> (i32, i32) {
    %c0_i32 = arith.constant 0 : i32
    %c0_i32_0 = arith.constant 0 : i32
    return %arg0, %c0_i32 : i32, i32
  }
  func.func @transform_1(%arg0: i32) -> (i32, i32) {
    %c0_i32 = arith.constant 0 : i32
    %c0_i32_0 = arith.constant 0 : i32
    return %arg0, %c0_i32 : i32, i32
  }
  func.func @transform_2(%arg0: i32) -> (i32, i32) {
    %c0_i32 = arith.constant 0 : i32
    %c0_i32_0 = arith.constant 0 : i32
    return %arg0, %c0_i32 : i32, i32
  }
  func.func @transform_3(%arg0: i32) -> (i32, i32) {
    %c0_i32 = arith.constant 0 : i32
    %c0_i32_0 = arith.constant 0 : i32
    return %arg0, %c0_i32 : i32, i32
  }
}

</mosaic_0001>

<llo_original>
// kernel: tpu_custom_call.1
$region0: #{tpu_custom_call.1}
  #allocation0 [shape = 'u32[]', space=smem, size = 0x4, offset = 0x4, fixed_abs, tag = 'smem constant byte address 0x4 - core index']
  #allocation1 [shape = 'u32[144,128]{1,0:T(1,128)}', space=vmem, size = 0x12000, scoped, tag = 'internal scratch']
  %s0 = inlined_call_operand.hbm [shape: f32[20,1024], index: 0, kind: input, shape index: {}]
  %s1 = inlined_call_operand.hbm [shape: f32[20,1024], index: 1, kind: input, shape index: {}]
  %s2 = inlined_call_operand.hbm [shape: f32[20,1024], index: 2, kind: input, shape index: {}]
  %s3 = inlined_call_operand.hbm [shape: f32[20,1024], index: 3, kind: output, shape index: {}]
  %s4 = sld [smem:[#allocation0]]
  $region57: #{tpu_custom_call.1} parent=0
    _
  %s6 = ssub.s32 1, %s4
  %s7 = scalar_select 0, %s6, %s4
  $region1: #{tpu_custom_call.1} parent=0
    #allocation2 [shape = 'u8[65536]{0}', space=vmem, size = 0x10000, scoped, tag = 'input window, operand 0']
    #allocation3 [shape = 's32[2]{0}', space=sflag, size = 0x8, scoped, tag = 'scoped memory for tpu_custom_call.1']
    #allocation4 [shape = 's32[2]{0}', space=sflag, size = 0x8, scoped, tag = 'scoped memory for tpu_custom_call.1']
    #allocation5 [shape = 'u8[65536]{0}', space=vmem, size = 0x10000, scoped, tag = 'input window, operand 1']
    #allocation6 [shape = 's32[2]{0}', space=sflag, size = 0x8, scoped, tag = 'scoped memory for tpu_custom_call.1']
    #allocation7 [shape = 'u8[65536]{0}', space=vmem, size = 0x10000, scoped, tag = 'input window, operand 2']
    #allocation8 [shape = 'u8[65536]{0}', space=vmem, size = 0x10000, scoped, tag = 'output window, operand 0']
    %8 = vsyncpa [#allocation3], 0
    %s9 = scalar_lea.sflag [#allocation3], 1
    %10 = vsyncpa %s9, 0
    %11 = vsyncpa [#allocation6], 0
    %s12 = scalar_lea.sflag [#allocation6], 1
    %13 = vsyncpa %s12, 0
    %14 = vsyncpa [#allocation4], 0
    %s15 = scalar_lea.sflag [#allocation4], 1
    %16 = vsyncpa %s15, 0
    loop: start=0, step=1, limit=5
    $region2: #{tpu_custom_call.1} parent=1 // loop_pre_header
      _
    $region3: #{tpu_custom_call.1} parent=1 // loop_header
      %s18 = sphi 0, %s22
      %p19 = scmp.ge.s32.totalorder %s18, 5
      %s28 = sphi 0, %s30
      %s31 = sphi 0, %s28
      %s32 = sphi 0, %s31
      %s48 = sphi 0, %s32
      %s54 = sphi 0, %s56
      %s57 = sphi 0, %s54
      %s58 = sphi 0, %s57
      %s74 = sphi 0, %s58
      %s80 = sphi 0, %s82
      %s83 = sphi 0, %s80
      %s84 = sphi 0, %s83
      %s100 = sphi 0, %s84
      %s106 = sphi 0, %s108
      %s109 = sphi 0, %s106
      %s110 = sphi 0, %s109
      %s126 = sphi 0, %s110
    $region4: #{tpu_custom_call.1} parent=1 // loop_header_branch
      %21 = sbr.rel (%p19) target = $region8
    $region5: #{tpu_custom_call.1} parent=1 // loop_body
      %s23 = ssub.s32 %s18, 1
      %s24 = ssub.s32 %s18, 2
      %s25 = sadd.s32 %s18, 1
      %s26 = ssub.s32 %s18, %s25
      %p27 = scmp.eq.s32.totalorder %s26, 0
      %s29 = sadd.s32 %s28, 1
      %s30 = scalar_select %p27, %s28, %s29
      %p33 = pneg %p27
      %p34 = scmp.eq.s32.totalorder %s18, 2
      %p35 = por %p33, %p34
      %p36 = scmp.ne.s32.totalorder %s28, %s31
      %p37 = scmp.eq.s32.totalorder %s18, 0
      %p38 = por %p36, %p37
      %p39 = scmp.ne.s32.totalorder %s28, %s31
      %p40 = scmp.eq.s32.totalorder %s23, 2
      %p41 = por %p39, %p40
      %p42 = scmp.ne.s32.totalorder %s31, %s32
      %p43 = scmp.eq.s32.totalorder %s23, 0
      %p44 = por %p42, %p43
      %p45 = scmp.ne.s32.totalorder %s31, %s32
      %p46 = scmp.eq.s32.totalorder %s24, 2
      %p47 = por %p45, %p46
      %p49 = scmp.ne.s32.totalorder %s32, %s48
      %p50 = scmp.eq.s32.totalorder %s24, 0
      %p51 = por %p49, %p50
      %s52 = ssub.s32 %s18, %s25
      %p53 = scmp.eq.s32.totalorder %s52, 0
      %s55 = sadd.s32 %s54, 1
      %s56 = scalar_select %p53, %s54, %s55
      %p59 = pneg %p53
      %p60 = scmp.eq.s32.totalorder %s18, 2
      %p61 = por %p59, %p60
      %p62 = scmp.ne.s32.totalorder %s54, %s57
      %p63 = scmp.eq.s32.totalorder %s18, 0
      %p64 = por %p62, %p63
      %p65 = scmp.ne.s32.totalorder %s54, %s57
      %p66 = scmp.eq.s32.totalorder %s23, 2
      %p67 = por %p65, %p66
      %p68 = scmp.ne.s32.totalorder %s57, %s58
      %p69 = scmp.eq.s32.totalorder %s23, 0
      %p70 = por %p68, %p69
      %p71 = scmp.ne.s32.totalorder %s57, %s58
      %p72 = scmp.eq.s32.totalorder %s24, 2
      %p73 = por %p71, %p72
      %p75 = scmp.ne.s32.totalorder %s58, %s74
      %p76 = scmp.eq.s32.totalorder %s24, 0
      %p77 = por %p75, %p76
      %s78 = ssub.s32 %s18, %s25
      %p79 = scmp.eq.s32.totalorder %s78, 0
      %s81 = sadd.s32 %s80, 1
      %s82 = scalar_select %p79, %s80, %s81
      %p85 = pneg %p79
      %p86 = scmp.eq.s32.totalorder %s18, 2
      %p87 = por %p85, %p86
      %p88 = scmp.ne.s32.totalorder %s80, %s83
      %p89 = scmp.eq.s32.totalorder %s18, 0
      %p90 = por %p88, %p89
      %p91 = scmp.ne.s32.totalorder %s80, %s83
      %p92 = scmp.eq.s32.totalorder %s23, 2
      %p93 = por %p91, %p92
      %p94 = scmp.ne.s32.totalorder %s83, %s84
      %p95 = scmp.eq.s32.totalorder %s23, 0
      %p96 = por %p94, %p95
      %p97 = scmp.ne.s32.totalorder %s83, %s84
      %p98 = scmp.eq.s32.totalorder %s24, 2
      %p99 = por %p97, %p98
      %p101 = scmp.ne.s32.totalorder %s84, %s100
      %p102 = scmp.eq.s32.totalorder %s24, 0
      %p103 = por %p101, %p102
      %s104 = ssub.s32 %s18, %s25
      %p105 = scmp.eq.s32.totalorder %s104, 0
      %s107 = sadd.s32 %s106, 1
      %s108 = scalar_select %p105, %s106, %s107
      %p111 = pneg %p105
      %p112 = scmp.eq.s32.totalorder %s18, 2
      %p113 = por %p111, %p112
      %p114 = scmp.ne.s32.totalorder %s106, %s109
      %p115 = scmp.eq.s32.totalorder %s18, 0
      %p116 = por %p114, %p115
      %p117 = scmp.ne.s32.totalorder %s106, %s109
      %p118 = scmp.eq.s32.totalorder %s23, 2
      %p119 = por %p117, %p118
      %p120 = scmp.ne.s32.totalorder %s109, %s110
      %p121 = scmp.eq.s32.totalorder %s23, 0
      %p122 = por %p120, %p121
      %p123 = scmp.ne.s32.totalorder %s109, %s110
      %p124 = scmp.eq.s32.totalorder %s24, 2
      %p125 = por %p123, %p124
      %p127 = scmp.ne.s32.totalorder %s110, %s126
      %p128 = scmp.eq.s32.totalorder %s24, 0
      %p129 = por %p127, %p128
      %p130 = scmp.le.s32.totalorder 1, %s18
      %p131 = scmp.lt.s32.totalorder %s18, 4
      %p132 = pnand %p130, %p131
      %p133 = pneg %p132
      // Predicated region
      $region9: #{tpu_custom_call.1} parent=5 // pred_check
        _
      $region10: #{tpu_custom_call.1} parent=5 // pred_check_branch
        %135 = sbr.rel (%p132) target = $region12
      $region11: #{tpu_custom_call.1} parent=5 // pred_region
        %s136 = ssub.s32 %s18, 1
      $region12: #{tpu_custom_call.1} parent=5 // pred_fallthru
        _
      %p137 = scmp.lt.s32.totalorder %s18, 3
      // Predicated region
      $region13: #{tpu_custom_call.1} parent=5 // pred_check
        %p138 = pneg %p137
      $region14: #{tpu_custom_call.1} parent=5 // pred_check_branch
        %140 = sbr.rel (%p138) target = $region16
      $region15: #{tpu_custom_call.1} parent=5 // pred_region
        // Predicated region
        $region17: #{tpu_custom_call.1} parent=15 // pred_check
          %p141 = pneg %p38
        $region18: #{tpu_custom_call.1} parent=15 // pred_check_branch
          %143 = sbr.rel (%p141) target = $region20
        $region19: #{tpu_custom_call.1} parent=15 // pred_region
          %s144 = sand.u32 %s28, 1
          %s145 = scalar_lea.sflag [#allocation3], %s144
          %s146 = sand.u32 %s28, 1
          %s147 = smul.addr %s146, 64
          %s148 = scalar_lea.vmem [#allocation2], %s147
          %s150 = ssub.s32 1024, 1024
          %151 = vsyncadd %s145, %s150
          %s152 = smul.addr %s18, 8
          %s153 = smul.addr %s152, 128
          %s154 = scalar_lea.hbm %s0, %s153
          %s156 = sshll.u32 %s148, 4
          %s157 = int_to_ptr.vmem [resolvable:$true] %s156
          %159 = dma.hbm_to_vmem [thread:$0]  %s154, 1024, %s157, %s145
        $region20: #{tpu_custom_call.1} parent=15 // pred_fallthru
          _
        // Predicated region
        $region21: #{tpu_custom_call.1} parent=15 // pred_check
          %p160 = pneg %p64
        $region22: #{tpu_custom_call.1} parent=15 // pred_check_branch
          %162 = sbr.rel (%p160) target = $region24
        $region23: #{tpu_custom_call.1} parent=15 // pred_region
          %s163 = sand.u32 %s18, 1
          %s164 = scalar_lea.sflag [#allocation6], %s163
          %s165 = sand.u32 %s54, 1
          %s166 = smul.addr %s165, 64
          %s167 = scalar_lea.vmem [#allocation5], %s166
          %s169 = ssub.s32 1024, 1024
          %170 = vsyncadd %s164, %s169
          %s171 = smul.addr %s18, 8
          %s172 = smul.addr %s171, 128
          %s173 = scalar_lea.hbm %s1, %s172
          %s175 = sshll.u32 %s167, 4
          %s176 = int_to_ptr.vmem [resolvable:$true] %s175
          %178 = dma.hbm_to_vmem [thread:$0]  %s173, 1024, %s176, %s164
        $region24: #{tpu_custom_call.1} parent=15 // pred_fallthru
          _
        // Predicated region
        $region25: #{tpu_custom_call.1} parent=15 // pred_check
          %p179 = pneg %p90
        $region26: #{tpu_custom_call.1} parent=15 // pred_check_branch
          %181 = sbr.rel (%p179) target = $region28
        $region27: #{tpu_custom_call.1} parent=15 // pred_region
          %s182 = sand.u32 %s18, 1
          %s183 = scalar_lea.sflag [#allocation6], %s182
          %s184 = sand.u32 %s80, 1
          %s185 = smul.addr %s184, 64
          %s186 = scalar_lea.vmem [#allocation7], %s185
          %s188 = ssub.s32 1024, 1024
          %189 = vsyncadd %s183, %s188
          %s190 = smul.addr %s18, 8
          %s191 = smul.addr %s190, 128
          %s192 = scalar_lea.hbm %s2, %s191
          %s194 = sshll.u32 %s186, 4
          %s195 = int_to_ptr.vmem [resolvable:$true] %s194
          %197 = dma.hbm_to_vmem [thread:$0]  %s192, 1024, %s195, %s183
        $region28: #{tpu_custom_call.1} parent=15 // pred_fallthru
          _
      $region16: #{tpu_custom_call.1} parent=5 // pred_fallthru
        _
      %p198 = scmp.le.s32.totalorder 1, %s18
      %p199 = scmp.lt.s32.totalorder %s18, 4
      %p200 = pnand %p198, %p199
      %p201 = pneg %p200
      // Predicated region
      $region29: #{tpu_custom_call.1} parent=5 // pred_check
        _
      $region30: #{tpu_custom_call.1} parent=5 // pred_check_branch
        %203 = sbr.rel (%p200) target = $region32
      $region31: #{tpu_custom_call.1} parent=5 // pred_region
        %s204 = ssub.s32 %s18, 1
        %s205 = sand.u32 %s31, 1
        %s206 = scalar_lea.sflag [#allocation3], %s205
        %s207 = sand.u32 %s31, 1
        %s208 = smul.addr %s207, 64
        %s209 = scalar_lea.vmem [#allocation2], %s208
        // Predicated region
        $region33: #{tpu_custom_call.1} parent=31 // pred_check
          %p210 = pneg %p44
        $region34: #{tpu_custom_call.1} parent=31 // pred_check_branch
          %212 = sbr.rel (%p210) target = $region36
        $region35: #{tpu_custom_call.1} parent=31 // pred_region
          %213 = dma.done %s206, 1024
        $region36: #{tpu_custom_call.1} parent=31 // pred_fallthru
          _
        %s214 = sand.u32 %s23, 1
        %s215 = scalar_lea.sflag [#allocation6], %s214
        %s216 = sand.u32 %s57, 1
        %s217 = smul.addr %s216, 64
        %s218 = scalar_lea.vmem [#allocation5], %s217
        // Predicated region
        $region37: #{tpu_custom_call.1} parent=31 // pred_check
          %p219 = pneg %p70
        $region38: #{tpu_custom_call.1} parent=31 // pred_check_branch
          %221 = sbr.rel (%p219) target = $region40
        $region39: #{tpu_custom_call.1} parent=31 // pred_region
          %222 = dma.done %s215, 1024
        $region40: #{tpu_custom_call.1} parent=31 // pred_fallthru
          _
        %s223 = sand.u32 %s23, 1
        %s224 = scalar_lea.sflag [#allocation6], %s223
        %s225 = sand.u32 %s83, 1
        %s226 = smul.addr %s225, 64
        %s227 = scalar_lea.vmem [#allocation7], %s226
        // Predicated region
        $region41: #{tpu_custom_call.1} parent=31 // pred_check
          %p228 = pneg %p96
        $region42: #{tpu_custom_call.1} parent=31 // pred_check_branch
          %230 = sbr.rel (%p228) target = $region44
        $region43: #{tpu_custom_call.1} parent=31 // pred_region
          %231 = dma.done %s224, 1024
        $region44: #{tpu_custom_call.1} parent=31 // pred_fallthru
          _
        %s232 = sand.u32 %s31, 1
        %s233 = scalar_lea.sflag [#allocation3], %s232
        %s234 = sand.u32 %s31, 1
        %s235 = smul.addr %s234, 64
        %s236 = scalar_lea.vmem [#allocation2], %s235
        %p237 = pneg %p44
        %p238 = pneg %p41
        %s239 = sand.u32 %s23, 1
        %s240 = scalar_lea.sflag [#allocation6], %s239
        %s241 = sand.u32 %s57, 1
        %s242 = smul.addr %s241, 64
        %s243 = scalar_lea.vmem [#allocation5], %s242
        %p244 = pneg %p70
        %p245 = pneg %p67
        %s246 = sand.u32 %s23, 1
        %s247 = scalar_lea.sflag [#allocation6], %s246
        %s248 = sand.u32 %s83, 1
        %s249 = smul.addr %s248, 64
        %s250 = scalar_lea.vmem [#allocation7], %s249
        %p251 = pneg %p96
        %p252 = pneg %p93
        %p253 = pneg %p122
        %p254 = pneg %p119
        %s255 = sand.u32 %s109, 1
        %s256 = scalar_lea.sflag [#allocation4], %s255
        %s257 = sand.u32 %s109, 1
        %s258 = smul.addr %s257, 64
        %s259 = scalar_lea.vmem [#allocation8], %s258
        %v260 = vld [vmem:[%s209] sm:$0xff]
        %v261 = vld [vmem:[%s209 + $0x8] sm:$0xff]
        %v262 = vld [vmem:[%s209 + $0x10] sm:$0xff]
        %v263 = vld [vmem:[%s209 + $0x18] sm:$0xff]
        %v264 = vld [vmem:[%s209 + $0x20] sm:$0xff]
        %v265 = vld [vmem:[%s209 + $0x28] sm:$0xff]
        %v266 = vld [vmem:[%s209 + $0x30] sm:$0xff]
        %v267 = vld [vmem:[%s209 + $0x38] sm:$0xff]
        %v268 = vld [vmem:[%s218] sm:$0xff]
        %v269 = vld [vmem:[%s218 + $0x8] sm:$0xff]
        %v270 = vld [vmem:[%s218 + $0x10] sm:$0xff]
        %v271 = vld [vmem:[%s218 + $0x18] sm:$0xff]
        %v272 = vld [vmem:[%s218 + $0x20] sm:$0xff]
        %v273 = vld [vmem:[%s218 + $0x28] sm:$0xff]
        %v274 = vld [vmem:[%s218 + $0x30] sm:$0xff]
        %v275 = vld [vmem:[%s218 + $0x38] sm:$0xff]
        %v276 = vsub.f32 %v260, %v268
        %v277 = vsub.f32 %v261, %v269
        %v278 = vsub.f32 %v262, %v270
        %v279 = vsub.f32 %v263, %v271
        %v280 = vsub.f32 %v264, %v272
        %v281 = vsub.f32 %v265, %v273
        %v282 = vsub.f32 %v266, %v274
        %v283 = vsub.f32 %v267, %v275
        %v284 = vand.u32 2147483647, %v276
        %v285 = vand.u32 2147483647, %v277
        %v286 = vand.u32 2147483647, %v278
        %v287 = vand.u32 2147483647, %v279
        %v288 = vand.u32 2147483647, %v280
        %v289 = vand.u32 2147483647, %v281
        %v290 = vand.u32 2147483647, %v282
        %v291 = vand.u32 2147483647, %v283
        %v292 = vld [vmem:[%s227] sm:$0xff]
        %v293 = vld [vmem:[%s227 + $0x8] sm:$0xff]
        %v294 = vld [vmem:[%s227 + $0x10] sm:$0xff]
        %v295 = vld [vmem:[%s227 + $0x18] sm:$0xff]
        %v296 = vld [vmem:[%s227 + $0x20] sm:$0xff]
        %v297 = vld [vmem:[%s227 + $0x28] sm:$0xff]
        %v298 = vld [vmem:[%s227 + $0x30] sm:$0xff]
        %v299 = vld [vmem:[%s227 + $0x38] sm:$0xff]
        %v300 = vmul.f32 %v284, %v292
        %v301 = vmul.f32 %v285, %v293
        %v302 = vmul.f32 %v286, %v294
        %v303 = vmul.f32 %v287, %v295
        %v304 = vmul.f32 %v288, %v296
        %v305 = vmul.f32 %v289, %v297
        %v306 = vmul.f32 %v290, %v298
        %v307 = vmul.f32 %v291, %v299
        %308 = vst [vmem:[%s259] sm:$0xff] %v300
        %309 = vst [vmem:[%s259 + $0x8] sm:$0xff] %v301
        %310 = vst [vmem:[%s259 + $0x10] sm:$0xff] %v302
        %311 = vst [vmem:[%s259 + $0x18] sm:$0xff] %v303
        %312 = vst [vmem:[%s259 + $0x20] sm:$0xff] %v304
        %313 = vst [vmem:[%s259 + $0x28] sm:$0xff] %v305
        %314 = vst [vmem:[%s259 + $0x30] sm:$0xff] %v306
        %315 = vst [vmem:[%s259 + $0x38] sm:$0xff] %v307
        %s316 = sand.u32 %s109, 1
        %s317 = scalar_lea.sflag [#allocation4], %s316
        %s318 = sand.u32 %s109, 1
        %s319 = smul.addr %s318, 64
        %s320 = scalar_lea.vmem [#allocation8], %s319
        // Predicated region
        $region45: #{tpu_custom_call.1} parent=31 // pred_check
          %p321 = pneg %p119
        $region46: #{tpu_custom_call.1} parent=31 // pred_check_branch
          %323 = sbr.rel (%p321) target = $region48
        $region47: #{tpu_custom_call.1} parent=31 // pred_region
          %s325 = ssub.s32 1024, 1024
          %326 = vsyncadd %s317, %s325
          %s327 = smul.addr %s23, 8
          %s328 = smul.addr %s327, 128
          %s329 = scalar_lea.hbm %s3, %s328
          %s331 = sshll.u32 %s320, 4
          %s332 = int_to_ptr.vmem [resolvable:$true] %s331
          %334 = dma.vmem_to_hbm [thread:$0]  %s332, 1024, %s329, %s317
        $region48: #{tpu_custom_call.1} parent=31 // pred_fallthru
          _
      $region32: #{tpu_custom_call.1} parent=5 // pred_fallthru
        _
      %p335 = scmp.le.s32.totalorder 2, %s18
      // Predicated region
      $region49: #{tpu_custom_call.1} parent=5 // pred_check
        %p336 = pneg %p335
      $region50: #{tpu_custom_call.1} parent=5 // pred_check_branch
        %338 = sbr.rel (%p336) target = $region52
      $region51: #{tpu_custom_call.1} parent=5 // pred_region
        %s339 = ssub.s32 %s18, 2
        // Predicated region
        $region53: #{tpu_custom_call.1} parent=51 // pred_check
          %p340 = pneg %p125
        $region54: #{tpu_custom_call.1} parent=51 // pred_check_branch
          %342 = sbr.rel (%p340) target = $region56
        $region55: #{tpu_custom_call.1} parent=51 // pred_region
          %s343 = sand.u32 %s110, 1
          %s344 = scalar_lea.sflag [#allocation4], %s343
          %s345 = sand.u32 %s110, 1
          %s346 = smul.addr %s345, 64
          %s347 = scalar_lea.vmem [#allocation8], %s346
          %348 = dma.done %s344, 1024
        $region56: #{tpu_custom_call.1} parent=51 // pred_fallthru
          _
      $region52: #{tpu_custom_call.1} parent=5 // pred_fallthru
        _
    $region6: #{tpu_custom_call.1} parent=1 // loop_footer
      %s22 = sadd.s32 1, %s18
    $region7: #{tpu_custom_call.1} parent=1 // loop_footer_branch
      %17 = sbr.rel target = $region3
    $region8: #{tpu_custom_call.1} parent=1 // loop_exit
      _
    %349 = vsyncpa [#allocation3], 1
    %s350 = scalar_lea.sflag [#allocation3], 1
    %351 = vsyncpa %s350, 1
    %352 = vsyncpa [#allocation6], 1
    %s353 = scalar_lea.sflag [#allocation6], 1
    %354 = vsyncpa %s353, 1
    %355 = vsyncpa [#allocation4], 1
    %s356 = scalar_lea.sflag [#allocation4], 1
    %357 = vsyncpa %s356, 1

</llo_original>
